<compile_context>
chip_gen: v7x
topology: tpu7x:2x2x1
jax: 0.10.0
libtpu: 0.0.40
codegen_flags: <defaults>
</compile_context>

<pallas_src>
import functools

import jax
import jax.numpy as jnp
from jax.experimental import pallas as pl
from jax.experimental.pallas import tpu as pltpu


def _orthogonal_loss_kernel(r_ref, i_ref, d_ref, o_ref,
                            r_acc, i_acc, d_acc, *, inv_s2):
    # r_ref/i_ref/d_ref: (1, C, S_TILE) block for (batch b, spatial tile st)
    # o_ref            : (1, 1, 1) per-batch partial loss
    # *_acc            : (1, C) f32 running per-channel raw sums over S
    st = pl.program_id(1)

    @pl.when(st == 0)
    def _():
        r_acc[...] = jnp.zeros_like(r_acc)
        i_acc[...] = jnp.zeros_like(i_acc)
        d_acc[...] = jnp.zeros_like(d_acc)

    # Per-step work: only three lane-reduces + adds (scaling/dot deferred).
    r_acc[...] += jnp.sum(r_ref[...].astype(jnp.float32), axis=-1)
    i_acc[...] += jnp.sum(i_ref[...].astype(jnp.float32), axis=-1)
    d_acc[...] += jnp.sum(d_ref[...].astype(jnp.float32), axis=-1)

    @pl.when(st == pl.num_programs(1) - 1)
    def _():
        rv = r_acc[...]
        iv = i_acc[...]
        dv = d_acc[...]
        total = jnp.sum(rv * iv + rv * dv + iv * dv) * inv_s2
        o_ref[...] = total.reshape(1, 1, 1)


def _choose_s_tile(c, s, itemsize):
    # 3 inputs x 2 pipeline buffers x max(C,8) x S_TILE x itemsize <= ~16 MiB:
    # fits the default scoped-VMEM limit on v5e/v6e and leaves ample headroom
    # inside v7x's 64 MiB physical VMEM, while keeping tiles large enough to
    # stay near the HBM roofline.
    budget = 16 * 1024 * 1024
    c_eff = max(c, 8)
    max_tile = budget // (3 * 2 * c_eff * itemsize)
    max_tile = max(128, (max_tile // 128) * 128)
    s_rounded = ((s + 127) // 128) * 128
    return min(max_tile, s_rounded)


def orthogonal_loss(rPPG_feat, id_feat, domain_feat):
    """Pallas implementation of OrthogonalLoss.forward.

    Inputs: NCTHW arrays of identical shape (N, C, T, H, W).
    Returns: scalar float32 loss.
    """
    n, c, t, h, w = rPPG_feat.shape
    s = t * h * w

    # Keep native dtype (e.g. bf16): the kernel is HBM-bandwidth bound, so we
    # avoid materializing f32 copies in HBM; accumulation is f32 in-kernel.
    r = rPPG_feat.reshape(n, c, s)
    i = id_feat.reshape(n, c, s)
    d = domain_feat.reshape(n, c, s)

    itemsize = jnp.dtype(r.dtype).itemsize
    s_tile = _choose_s_tile(c, s, itemsize)
    s_padded = ((s + s_tile - 1) // s_tile) * s_tile
    if s_padded != s:
        # Zero padding is correctness-neutral for a sum reduction.
        pad = ((0, 0), (0, 0), (0, s_padded - s))
        r = jnp.pad(r, pad)
        i = jnp.pad(i, pad)
        d = jnp.pad(d, pad)

    grid = (n, s_padded // s_tile)
    in_spec = pl.BlockSpec((1, c, s_tile), lambda b, st: (b, 0, st))
    out_spec = pl.BlockSpec((1, 1, 1), lambda b, st: (b, 0, 0))

    kernel = functools.partial(_orthogonal_loss_kernel,
                               inv_s2=float(1.0 / (s * s)))

    partial_losses = pl.pallas_call(
        kernel,
        out_shape=jax.ShapeDtypeStruct((n, 1, 1), jnp.float32),
        grid_spec=pltpu.PrefetchScalarGridSpec(
            num_scalar_prefetch=0,
            grid=grid,
            in_specs=[in_spec, in_spec, in_spec],
            out_specs=out_spec,
            scratch_shapes=[pltpu.VMEM((1, c), jnp.float32)] * 3,
        ),
        compiler_params=pltpu.CompilerParams(
            # Batch axis is independent (per-batch outputs) -> parallel so
            # v7x megacore shards it across both TensorCores; the spatial
            # reduction axis stays "arbitrary" (accumulates into scratch).
            dimension_semantics=("parallel", "arbitrary"),
        ),
    )(r, i, d)

    return jnp.sum(partial_losses)


def _reference(rPPG_feat, id_feat, domain_feat):
    # Pure-JAX reference mirroring the PyTorch module exactly.
    r_vec = jnp.mean(rPPG_feat.astype(jnp.float32), axis=(2, 3, 4))
    i_vec = jnp.mean(id_feat.astype(jnp.float32), axis=(2, 3, 4))
    d_vec = jnp.mean(domain_feat.astype(jnp.float32), axis=(2, 3, 4))
    return jnp.sum(
        jnp.sum(r_vec * i_vec, axis=-1)
        + jnp.sum(r_vec * d_vec, axis=-1)
        + jnp.sum(i_vec * d_vec, axis=-1)
    )


if __name__ == "__main__":
    key = jax.random.PRNGKey(0)
    k1, k2, k3 = jax.random.split(key, 3)

    # Small shapes consistent with the module: (N, C, T, H, W)
    N, C, T, H, W = 2, 4, 4, 8, 8
    rPPG_feat = jax.random.normal(k1, (N, C, T, H, W), dtype=jnp.float32)
    id_feat = jax.random.normal(k2, (N, C, T, H, W), dtype=jnp.float32)
    domain_feat = jax.random.normal(k3, (N, C, T, H, W), dtype=jnp.float32)

    loss = orthogonal_loss(rPPG_feat, id_feat, domain_feat)
    loss = jax.block_until_ready(loss)
    ref = _reference(rPPG_feat, id_feat, domain_feat)
    assert jnp.allclose(loss, ref, rtol=1e-5, atol=1e-5), (loss, ref)

    # Ragged spatial size (exercises the zero-padding path: S = 3*5*7 = 105).
    Tr, Hr, Wr = 3, 5, 7
    r2 = jax.random.normal(k1, (N, C, Tr, Hr, Wr), dtype=jnp.float32)
    i2 = jax.random.normal(k2, (N, C, Tr, Hr, Wr), dtype=jnp.float32)
    d2 = jax.random.normal(k3, (N, C, Tr, Hr, Wr), dtype=jnp.float32)
    loss2 = jax.block_until_ready(orthogonal_loss(r2, i2, d2))
    ref2 = _reference(r2, i2, d2)
    assert jnp.allclose(loss2, ref2, rtol=1e-5, atol=1e-5), (loss2, ref2)

    print("KERNEL_OK")
</pallas_src>

<mosaic_0001>
module attributes {stable_mosaic.version = 11 : i64} {
  func.func @_orthogonal_loss_kernel(%arg0: i32, %arg1: i32, %arg2: memref<1x4x256xf32, #tpu.memory_space<vmem>>, %arg3: memref<1x4x256xf32, #tpu.memory_space<vmem>>, %arg4: memref<1x4x256xf32, #tpu.memory_space<vmem>>, %arg5: memref<1x1x1xf32, #tpu.memory_space<vmem>>, %arg6: memref<1x4xf32, #tpu.memory_space<vmem>>, %arg7: memref<1x4xf32, #tpu.memory_space<vmem>>, %arg8: memref<1x4xf32, #tpu.memory_space<vmem>>) attributes {dimension_semantics = [#tpu.dimension_semantics<parallel>, #tpu.dimension_semantics<arbitrary>], iteration_bounds = array<i64: 2, 1>, scalar_prefetch = 0 : i64, scratch_operands = 3 : i64, tpu.core_type = #tpu.core_type<tc>, window_params = [{transform_indices = @transform_0, window_bounds = array<i64: 1, 4, 256>}, {transform_indices = @transform_1, window_bounds = array<i64: 1, 4, 256>}, {transform_indices = @transform_2, window_bounds = array<i64: 1, 4, 256>}, {transform_indices = @transform_3, window_bounds = array<i64: 1, 1, 1>}]} {
    %c0_i32 = arith.constant 0 : i32
    %0 = arith.cmpi eq, %arg1, %c0_i32 : i32
    %1 = arith.extui %0 : i1 to i32
    %c0_i32_0 = arith.constant 0 : i32
    %2 = arith.cmpi ne, %1, %c0_i32_0 : i32
    scf.if %2 {
      %cst_25 = arith.constant 0.000000e+00 : f32
      %21 = vector.broadcast %cst_25 : f32 to vector<1x4xf32>
      %c0_26 = arith.constant 0 : index
      %c0_27 = arith.constant 0 : index
      %22 = vector.load %arg6[%c0_26, %c0_27] : memref<1x4xf32, #tpu.memory_space<vmem>>, vector<1x4xf32>
      tpu.vector_store %arg6[%c0_26, %c0_27], %21 {strides = array<i32>} : memref<1x4xf32, #tpu.memory_space<vmem>>, vector<1x4xf32>,
      %cst_28 = arith.constant 0.000000e+00 : f32
      %23 = vector.broadcast %cst_28 : f32 to vector<1x4xf32>
      %c0_29 = arith.constant 0 : index
      %c0_30 = arith.constant 0 : index
      %24 = vector.load %arg7[%c0_29, %c0_30] : memref<1x4xf32, #tpu.memory_space<vmem>>, vector<1x4xf32>
      tpu.vector_store %arg7[%c0_29, %c0_30], %23 {strides = array<i32>} : memref<1x4xf32, #tpu.memory_space<vmem>>, vector<1x4xf32>,
      %cst_31 = arith.constant 0.000000e+00 : f32
      %25 = vector.broadcast %cst_31 : f32 to vector<1x4xf32>
      %c0_32 = arith.constant 0 : index
      %c0_33 = arith.constant 0 : index
      %26 = vector.load %arg8[%c0_32, %c0_33] : memref<1x4xf32, #tpu.memory_space<vmem>>, vector<1x4xf32>
      tpu.vector_store %arg8[%c0_32, %c0_33], %25 {strides = array<i32>} : memref<1x4xf32, #tpu.memory_space<vmem>>, vector<1x4xf32>,
    } else {
    }
    %c0 = arith.constant 0 : index
    %c0_1 = arith.constant 0 : index
    %3 = vector.load %arg6[%c0, %c0_1] : memref<1x4xf32, #tpu.memory_space<vmem>>, vector<1x4xf32>
    %c0_2 = arith.constant 0 : index
    %c0_3 = arith.constant 0 : index
    %c0_4 = arith.constant 0 : index
    %4 = vector.load %arg2[%c0_2, %c0_3, %c0_4] : memref<1x4x256xf32, #tpu.memory_space<vmem>>, vector<1x4x256xf32>
    %cst = arith.constant dense<0.000000e+00> : vector<1x4xf32>
    %5 = vector.multi_reduction <add>, %4, %cst [2] : vector<1x4x256xf32> to vector<1x4xf32>
    %6 = arith.addf %3, %5 : vector<1x4xf32>
    %c0_5 = arith.constant 0 : index
    %c0_6 = arith.constant 0 : index
    %7 = vector.load %arg6[%c0_5, %c0_6] : memref<1x4xf32, #tpu.memory_space<vmem>>, vector<1x4xf32>
    tpu.vector_store %arg6[%c0_5, %c0_6], %6 {strides = array<i32>} : memref<1x4xf32, #tpu.memory_space<vmem>>, vector<1x4xf32>,
    %c0_7 = arith.constant 0 : index
    %c0_8 = arith.constant 0 : index
    %8 = vector.load %arg7[%c0_7, %c0_8] : memref<1x4xf32, #tpu.memory_space<vmem>>, vector<1x4xf32>
    %c0_9 = arith.constant 0 : index
    %c0_10 = arith.constant 0 : index
    %c0_11 = arith.constant 0 : index
    %9 = vector.load %arg3[%c0_9, %c0_10, %c0_11] : memref<1x4x256xf32, #tpu.memory_space<vmem>>, vector<1x4x256xf32>
    %cst_12 = arith.constant dense<0.000000e+00> : vector<1x4xf32>
    %10 = vector.multi_reduction <add>, %9, %cst_12 [2] : vector<1x4x256xf32> to vector<1x4xf32>
    %11 = arith.addf %8, %10 : vector<1x4xf32>
    %c0_13 = arith.constant 0 : index
    %c0_14 = arith.constant 0 : index
    %12 = vector.load %arg7[%c0_13, %c0_14] : memref<1x4xf32, #tpu.memory_space<vmem>>, vector<1x4xf32>
    tpu.vector_store %arg7[%c0_13, %c0_14], %11 {strides = array<i32>} : memref<1x4xf32, #tpu.memory_space<vmem>>, vector<1x4xf32>,
    %c0_15 = arith.constant 0 : index
    %c0_16 = arith.constant 0 : index
    %13 = vector.load %arg8[%c0_15, %c0_16] : memref<1x4xf32, #tpu.memory_space<vmem>>, vector<1x4xf32>
    %c0_17 = arith.constant 0 : index
    %c0_18 = arith.constant 0 : index
    %c0_19 = arith.constant 0 : index
    %14 = vector.load %arg4[%c0_17, %c0_18, %c0_19] : memref<1x4x256xf32, #tpu.memory_space<vmem>>, vector<1x4x256xf32>
    %cst_20 = arith.constant dense<0.000000e+00> : vector<1x4xf32>
    %15 = vector.multi_reduction <add>, %14, %cst_20 [2] : vector<1x4x256xf32> to vector<1x4xf32>
    %16 = arith.addf %13, %15 : vector<1x4xf32>
    %c0_21 = arith.constant 0 : index
    %c0_22 = arith.constant 0 : index
    %17 = vector.load %arg8[%c0_21, %c0_22] : memref<1x4xf32, #tpu.memory_space<vmem>>, vector<1x4xf32>
    tpu.vector_store %arg8[%c0_21, %c0_22], %16 {strides = array<i32>} : memref<1x4xf32, #tpu.memory_space<vmem>>, vector<1x4xf32>,
    %c0_i32_23 = arith.constant 0 : i32
    %18 = arith.cmpi eq, %arg1, %c0_i32_23 : i32
    %19 = arith.extui %18 : i1 to i32
    %c0_i32_24 = arith.constant 0 : i32
    %20 = arith.cmpi ne, %19, %c0_i32_24 : i32
    scf.if %20 {
      %c0_25 = arith.constant 0 : index
      %c0_26 = arith.constant 0 : index
      %21 = vector.load %arg6[%c0_25, %c0_26] : memref<1x4xf32, #tpu.memory_space<vmem>>, vector<1x4xf32>
      %c0_27 = arith.constant 0 : index
      %c0_28 = arith.constant 0 : index
      %22 = vector.load %arg7[%c0_27, %c0_28] : memref<1x4xf32, #tpu.memory_space<vmem>>, vector<1x4xf32>
      %c0_29 = arith.constant 0 : index
      %c0_30 = arith.constant 0 : index
      %23 = vector.load %arg8[%c0_29, %c0_30] : memref<1x4xf32, #tpu.memory_space<vmem>>, vector<1x4xf32>
      %24 = arith.mulf %21, %22 : vector<1x4xf32>
      %25 = arith.mulf %21, %23 : vector<1x4xf32>
      %26 = arith.addf %24, %25 : vector<1x4xf32>
      %27 = arith.mulf %22, %23 : vector<1x4xf32>
      %28 = arith.addf %26, %27 : vector<1x4xf32>
      %29 = vector.shape_cast %28 : vector<1x4xf32> to vector<1x1x4xf32>
      %cst_31 = arith.constant dense<0.000000e+00> : vector<1xf32>
      %30 = vector.multi_reduction <add>, %29, %cst_31 [1, 2] : vector<1x1x4xf32> to vector<1xf32>
      %31 = vector.shape_cast %30 : vector<1xf32> to vector<1x1x1xf32>
      %32 = vector.extract %31[0, 0, 0] : f32 from vector<1x1x1xf32>
      %cst_32 = arith.constant 1.52587891E-5 : f32
      %33 = arith.mulf %32, %cst_32 : f32
      %34 = vector.broadcast %33 : f32 to vector<1x1x1xf32>
      %c0_33 = arith.constant 0 : index
      %c0_34 = arith.constant 0 : index
      %c0_35 = arith.constant 0 : index
      %35 = vector.load %arg5[%c0_33, %c0_34, %c0_35] : memref<1x1x1xf32, #tpu.memory_space<vmem>>, vector<1x1x1xf32>
      tpu.vector_store %arg5[%c0_33, %c0_34, %c0_35], %34 {strides = array<i32>} : memref<1x1x1xf32, #tpu.memory_space<vmem>>, vector<1x1x1xf32>,
    } else {
    }
    return
  }
  func.func @transform_0(%arg0: i32, %arg1: i32) -> (i32, i32, i32) {
    %c0_i32 = arith.constant 0 : i32
    %c0_i32_0 = arith.constant 0 : i32
    return %arg0, %c0_i32, %arg1 : i32, i32, i32
  }
  func.func @transform_1(%arg0: i32, %arg1: i32) -> (i32, i32, i32) {
    %c0_i32 = arith.constant 0 : i32
    %c0_i32_0 = arith.constant 0 : i32
    return %arg0, %c0_i32, %arg1 : i32, i32, i32
  }
  func.func @transform_2(%arg0: i32, %arg1: i32) -> (i32, i32, i32) {
    %c0_i32 = arith.constant 0 : i32
    %c0_i32_0 = arith.constant 0 : i32
    return %arg0, %c0_i32, %arg1 : i32, i32, i32
  }
  func.func @transform_3(%arg0: i32, %arg1: i32) -> (i32, i32, i32) {
    %c0_i32 = arith.constant 0 : i32
    %c0_i32_0 = arith.constant 0 : i32
    %c0_i32_1 = arith.constant 0 : i32
    return %arg0, %c0_i32, %c0_i32_0 : i32, i32, i32
  }
}

</mosaic_0001>

<llo_original>
// kernel: tpu_custom_call.1
$region0: #{tpu_custom_call.1}
  #allocation0 [shape = 'u32[]', space=smem, size = 0x4, offset = 0x4, fixed_abs, tag = 'smem constant byte address 0x4 - core index']
  #allocation1 [shape = 'u32[144,128]{1,0:T(1,128)}', space=vmem, size = 0x12000, scoped, tag = 'internal scratch']
  #allocation2 [shape = 'f32[1,4]{1,0:T(1,128)}', space=vmem, size = 0x200, scoped, tag = 'scratch operand']
  #allocation3 [shape = 'f32[1,4]{1,0:T(1,128)}', space=vmem, size = 0x200, scoped, tag = 'scratch operand']
  #allocation4 [shape = 'f32[1,4]{1,0:T(1,128)}', space=vmem, size = 0x200, scoped, tag = 'scratch operand']
  %s0 = inlined_call_operand.hbm [shape: f32[2,4,256], index: 0, kind: input, shape index: {}]
  %s1 = inlined_call_operand.hbm [shape: f32[2,4,256], index: 1, kind: input, shape index: {}]
  %s2 = inlined_call_operand.hbm [shape: f32[2,4,256], index: 2, kind: input, shape index: {}]
  %s3 = inlined_call_operand.vmem [shape: f32[2,1,1], index: 3, kind: output, shape index: {}]
  %s4 = sld [smem:[#allocation0]]
  $region65: #{tpu_custom_call.1} parent=0
    _
  %s6 = ssub.s32 1, %s4
  %s7 = scalar_select 0, %s6, %s4
  $region1: #{tpu_custom_call.1} parent=0
    #allocation5 [shape = 'u8[8192]{0}', space=vmem, size = 0x2000, scoped, tag = 'input window, operand 0']
    #allocation6 [shape = 's32[2]{0}', space=sflag, size = 0x8, scoped, tag = 'scoped memory for tpu_custom_call.1']
    #allocation7 [shape = 'u8[8192]{0}', space=vmem, size = 0x2000, scoped, tag = 'input window, operand 1']
    #allocation8 [shape = 's32[2]{0}', space=sflag, size = 0x8, scoped, tag = 'scoped memory for tpu_custom_call.1']
    #allocation9 [shape = 'u8[8192]{0}', space=vmem, size = 0x2000, scoped, tag = 'input window, operand 2']
    %8 = vsyncpa [#allocation6], 0
    %s9 = scalar_lea.sflag [#allocation6], 1
    %10 = vsyncpa %s9, 0
    %11 = vsyncpa [#allocation8], 0
    %s12 = scalar_lea.sflag [#allocation8], 1
    %13 = vsyncpa %s12, 0
    loop: start=0, step=1, limit=4
    $region2: #{tpu_custom_call.1} parent=1 // loop_pre_header
      _
    $region3: #{tpu_custom_call.1} parent=1 // loop_header
      %s15 = sphi 0, %s19
      %p16 = scmp.ge.s32.totalorder %s15, 4
      %s22 = sphi 0, %s34
      %s23 = sphi 0, %s30
      %s24 = sphi 0, %s22
      %s25 = sphi 0, %s23
      %s26 = sphi 0, %s24
      %s27 = sphi 0, %s25
      %s39 = sphi 0, %s41
      %s42 = sphi 0, %s39
      %s43 = sphi 0, %s42
      %s59 = sphi 0, %s43
      %s67 = sphi 0, %s69
      %s70 = sphi 0, %s67
      %s71 = sphi 0, %s70
      %s87 = sphi 0, %s71
      %s95 = sphi 0, %s97
      %s98 = sphi 0, %s95
      %s99 = sphi 0, %s98
      %s115 = sphi 0, %s99
      %s121 = sphi 0, %s123
      %s124 = sphi 0, %s121
      %s125 = sphi 0, %s124
      %s141 = sphi 0, %s125
    $region4: #{tpu_custom_call.1} parent=1 // loop_header_branch
      %18 = sbr.rel (%p16) target = $region8
    $region5: #{tpu_custom_call.1} parent=1 // loop_body
      %s20 = ssub.s32 %s15, 1
      %s21 = ssub.s32 %s15, 2
      %s28 = sadd.s32 1, %s23
      %p29 = scmp.ge.s32.totalorder %s28, 1
      %s30 = scalar_select %p29, 0, %s28
      %s31 = sadd.s32 1, %s22
      %s32 = scalar_select %p29, %s31, %s22
      %p33 = scmp.ge.s32.totalorder %s32, 2
      %s34 = scalar_select %p33, 0, %s32
      %s35 = ssub.s32 %s22, %s34
      %s36 = ssub.s32 %s23, %s30
      %s37 = sor.u32 %s35, %s36
      %p38 = scmp.eq.s32.totalorder %s37, 0
      %s40 = sadd.s32 %s39, 1
      %s41 = scalar_select %p38, %s39, %s40
      %p44 = pneg %p38
      %p45 = scmp.eq.s32.totalorder %s15, 1
      %p46 = por %p44, %p45
      %p47 = scmp.ne.s32.totalorder %s39, %s42
      %p48 = scmp.eq.s32.totalorder %s15, 0
      %p49 = por %p47, %p48
      %p50 = scmp.ne.s32.totalorder %s39, %s42
      %p51 = scmp.eq.s32.totalorder %s20, 1
      %p52 = por %p50, %p51
      %p53 = scmp.ne.s32.totalorder %s42, %s43
      %p54 = scmp.eq.s32.totalorder %s20, 0
      %p55 = por %p53, %p54
      %p56 = scmp.ne.s32.totalorder %s42, %s43
      %p57 = scmp.eq.s32.totalorder %s21, 1
      %p58 = por %p56, %p57
      %p60 = scmp.ne.s32.totalorder %s43, %s59
      %p61 = scmp.eq.s32.totalorder %s21, 0
      %p62 = por %p60, %p61
      %s63 = ssub.s32 %s22, %s34
      %s64 = ssub.s32 %s23, %s30
      %s65 = sor.u32 %s63, %s64
      %p66 = scmp.eq.s32.totalorder %s65, 0
      %s68 = sadd.s32 %s67, 1
      %s69 = scalar_select %p66, %s67, %s68
      %p72 = pneg %p66
      %p73 = scmp.eq.s32.totalorder %s15, 1
      %p74 = por %p72, %p73
      %p75 = scmp.ne.s32.totalorder %s67, %s70
      %p76 = scmp.eq.s32.totalorder %s15, 0
      %p77 = por %p75, %p76
      %p78 = scmp.ne.s32.totalorder %s67, %s70
      %p79 = scmp.eq.s32.totalorder %s20, 1
      %p80 = por %p78, %p79
      %p81 = scmp.ne.s32.totalorder %s70, %s71
      %p82 = scmp.eq.s32.totalorder %s20, 0
      %p83 = por %p81, %p82
      %p84 = scmp.ne.s32.totalorder %s70, %s71
      %p85 = scmp.eq.s32.totalorder %s21, 1
      %p86 = por %p84, %p85
      %p88 = scmp.ne.s32.totalorder %s71, %s87
      %p89 = scmp.eq.s32.totalorder %s21, 0
      %p90 = por %p88, %p89
      %s91 = ssub.s32 %s22, %s34
      %s92 = ssub.s32 %s23, %s30
      %s93 = sor.u32 %s91, %s92
      %p94 = scmp.eq.s32.totalorder %s93, 0
      %s96 = sadd.s32 %s95, 1
      %s97 = scalar_select %p94, %s95, %s96
      %p100 = pneg %p94
      %p101 = scmp.eq.s32.totalorder %s15, 1
      %p102 = por %p100, %p101
      %p103 = scmp.ne.s32.totalorder %s95, %s98
      %p104 = scmp.eq.s32.totalorder %s15, 0
      %p105 = por %p103, %p104
      %p106 = scmp.ne.s32.totalorder %s95, %s98
      %p107 = scmp.eq.s32.totalorder %s20, 1
      %p108 = por %p106, %p107
      %p109 = scmp.ne.s32.totalorder %s98, %s99
      %p110 = scmp.eq.s32.totalorder %s20, 0
      %p111 = por %p109, %p110
      %p112 = scmp.ne.s32.totalorder %s98, %s99
      %p113 = scmp.eq.s32.totalorder %s21, 1
      %p114 = por %p112, %p113
      %p116 = scmp.ne.s32.totalorder %s99, %s115
      %p117 = scmp.eq.s32.totalorder %s21, 0
      %p118 = por %p116, %p117
      %s119 = ssub.s32 %s22, %s34
      %p120 = scmp.eq.s32.totalorder %s119, 0
      %s122 = sadd.s32 %s121, 1
      %s123 = scalar_select %p120, %s121, %s122
      %p126 = pneg %p120
      %p127 = scmp.eq.s32.totalorder %s15, 1
      %p128 = por %p126, %p127
      %p129 = scmp.ne.s32.totalorder %s121, %s124
      %p130 = scmp.eq.s32.totalorder %s15, 0
      %p131 = por %p129, %p130
      %p132 = scmp.ne.s32.totalorder %s121, %s124
      %p133 = scmp.eq.s32.totalorder %s20, 1
      %p134 = por %p132, %p133
      %p135 = scmp.ne.s32.totalorder %s124, %s125
      %p136 = scmp.eq.s32.totalorder %s20, 0
      %p137 = por %p135, %p136
      %p138 = scmp.ne.s32.totalorder %s124, %s125
      %p139 = scmp.eq.s32.totalorder %s21, 1
      %p140 = por %p138, %p139
      %p142 = scmp.ne.s32.totalorder %s125, %s141
      %p143 = scmp.eq.s32.totalorder %s21, 0
      %p144 = por %p142, %p143
      %p145 = scmp.le.s32.totalorder 1, %s15
      %p146 = scmp.lt.s32.totalorder %s15, 3
      %p147 = pnand %p145, %p146
      %p148 = pneg %p147
      // Predicated region
      $region9: #{tpu_custom_call.1} parent=5 // pred_check
        _
      $region10: #{tpu_custom_call.1} parent=5 // pred_check_branch
        %150 = sbr.rel (%p147) target = $region12
      $region11: #{tpu_custom_call.1} parent=5 // pred_region
        %s151 = ssub.s32 %s15, 1
      $region12: #{tpu_custom_call.1} parent=5 // pred_fallthru
        _
      %p152 = scmp.lt.s32.totalorder %s15, 2
      // Predicated region
      $region13: #{tpu_custom_call.1} parent=5 // pred_check
        %p153 = pneg %p152
      $region14: #{tpu_custom_call.1} parent=5 // pred_check_branch
        %155 = sbr.rel (%p153) target = $region16
      $region15: #{tpu_custom_call.1} parent=5 // pred_region
        // Predicated region
        $region17: #{tpu_custom_call.1} parent=15 // pred_check
          %p156 = pneg %p49
        $region18: #{tpu_custom_call.1} parent=15 // pred_check_branch
          %158 = sbr.rel (%p156) target = $region20
        $region19: #{tpu_custom_call.1} parent=15 // pred_region
          %s159 = sand.u32 %s39, 1
          %s160 = scalar_lea.sflag [#allocation6], %s159
          %s161 = sand.u32 %s39, 1
          %s162 = smul.addr %s161, 8
          %s163 = scalar_lea.vmem [#allocation5], %s162
          %s164 = smul.u32 2, %s23
          %s166 = ssub.s32 128, 128
          %167 = vsyncadd %s160, %s166
          %s168 = smul.addr %s22, 2
          %s169 = sadd.s32 %s164, %s168
          %s170 = smul.addr %s169, 64
          %s171 = scalar_lea.hbm %s0, %s170
          %s173 = sshll.u32 %s163, 4
          %s174 = int_to_ptr.vmem [resolvable:$true] %s173
          %176 = dma.hbm_to_vmem [thread:$0]  %s171, 128, %s174, %s160
        $region20: #{tpu_custom_call.1} parent=15 // pred_fallthru
          _
        // Predicated region
        $region21: #{tpu_custom_call.1} parent=15 // pred_check
          %p177 = pneg %p77
        $region22: #{tpu_custom_call.1} parent=15 // pred_check_branch
          %179 = sbr.rel (%p177) target = $region24
        $region23: #{tpu_custom_call.1} parent=15 // pred_region
          %s180 = sand.u32 %s15, 1
          %s181 = scalar_lea.sflag [#allocation8], %s180
          %s182 = sand.u32 %s67, 1
          %s183 = smul.addr %s182, 8
          %s184 = scalar_lea.vmem [#allocation7], %s183
          %s185 = smul.u32 2, %s23
          %s187 = ssub.s32 128, 128
          %188 = vsyncadd %s181, %s187
          %s189 = smul.addr %s22, 2
          %s190 = sadd.s32 %s185, %s189
          %s191 = smul.addr %s190, 64
          %s192 = scalar_lea.hbm %s1, %s191
          %s194 = sshll.u32 %s184, 4
          %s195 = int_to_ptr.vmem [resolvable:$true] %s194
          %197 = dma.hbm_to_vmem [thread:$0]  %s192, 128, %s195, %s181
        $region24: #{tpu_custom_call.1} parent=15 // pred_fallthru
          _
        // Predicated region
        $region25: #{tpu_custom_call.1} parent=15 // pred_check
          %p198 = pneg %p105
        $region26: #{tpu_custom_call.1} parent=15 // pred_check_branch
          %200 = sbr.rel (%p198) target = $region28
        $region27: #{tpu_custom_call.1} parent=15 // pred_region
          %s201 = sand.u32 %s15, 1
          %s202 = scalar_lea.sflag [#allocation8], %s201
          %s203 = sand.u32 %s95, 1
          %s204 = smul.addr %s203, 8
          %s205 = scalar_lea.vmem [#allocation9], %s204
          %s206 = smul.u32 2, %s23
          %s208 = ssub.s32 128, 128
          %209 = vsyncadd %s202, %s208
          %s210 = smul.addr %s22, 2
          %s211 = sadd.s32 %s206, %s210
          %s212 = smul.addr %s211, 64
          %s213 = scalar_lea.hbm %s2, %s212
          %s215 = sshll.u32 %s205, 4
          %s216 = int_to_ptr.vmem [resolvable:$true] %s215
          %218 = dma.hbm_to_vmem [thread:$0]  %s213, 128, %s216, %s202
        $region28: #{tpu_custom_call.1} parent=15 // pred_fallthru
          _
      $region16: #{tpu_custom_call.1} parent=5 // pred_fallthru
        _
      %p219 = scmp.le.s32.totalorder 1, %s15
      %p220 = scmp.lt.s32.totalorder %s15, 3
      %p221 = pnand %p219, %p220
      %p222 = pneg %p221
      // Predicated region
      $region29: #{tpu_custom_call.1} parent=5 // pred_check
        _
      $region30: #{tpu_custom_call.1} parent=5 // pred_check_branch
        %224 = sbr.rel (%p221) target = $region32
      $region31: #{tpu_custom_call.1} parent=5 // pred_region
        %s225 = ssub.s32 %s15, 1
        %s226 = sand.u32 %s42, 1
        %s227 = scalar_lea.sflag [#allocation6], %s226
        %s228 = sand.u32 %s42, 1
        %s229 = smul.addr %s228, 8
        %s230 = scalar_lea.vmem [#allocation5], %s229
        // Predicated region
        $region33: #{tpu_custom_call.1} parent=31 // pred_check
          %p231 = pneg %p55
        $region34: #{tpu_custom_call.1} parent=31 // pred_check_branch
          %233 = sbr.rel (%p231) target = $region36
        $region35: #{tpu_custom_call.1} parent=31 // pred_region
          %234 = dma.done %s227, 128
        $region36: #{tpu_custom_call.1} parent=31 // pred_fallthru
          _
        %s235 = sand.u32 %s20, 1
        %s236 = scalar_lea.sflag [#allocation8], %s235
        %s237 = sand.u32 %s70, 1
        %s238 = smul.addr %s237, 8
        %s239 = scalar_lea.vmem [#allocation7], %s238
        // Predicated region
        $region37: #{tpu_custom_call.1} parent=31 // pred_check
          %p240 = pneg %p83
        $region38: #{tpu_custom_call.1} parent=31 // pred_check_branch
          %242 = sbr.rel (%p240) target = $region40
        $region39: #{tpu_custom_call.1} parent=31 // pred_region
          %243 = dma.done %s236, 128
        $region40: #{tpu_custom_call.1} parent=31 // pred_fallthru
          _
        %s244 = sand.u32 %s20, 1
        %s245 = scalar_lea.sflag [#allocation8], %s244
        %s246 = sand.u32 %s98, 1
        %s247 = smul.addr %s246, 8
        %s248 = scalar_lea.vmem [#allocation9], %s247
        // Predicated region
        $region41: #{tpu_custom_call.1} parent=31 // pred_check
          %p249 = pneg %p111
        $region42: #{tpu_custom_call.1} parent=31 // pred_check_branch
          %251 = sbr.rel (%p249) target = $region44
        $region43: #{tpu_custom_call.1} parent=31 // pred_region
          %252 = dma.done %s245, 128
        $region44: #{tpu_custom_call.1} parent=31 // pred_fallthru
          _
        %s253 = sand.u32 %s42, 1
        %s254 = scalar_lea.sflag [#allocation6], %s253
        %s255 = sand.u32 %s42, 1
        %s256 = smul.addr %s255, 8
        %s257 = scalar_lea.vmem [#allocation5], %s256
        %p258 = pneg %p55
        %p259 = pneg %p52
        %s260 = sand.u32 %s20, 1
        %s261 = scalar_lea.sflag [#allocation8], %s260
        %s262 = sand.u32 %s70, 1
        %s263 = smul.addr %s262, 8
        %s264 = scalar_lea.vmem [#allocation7], %s263
        %p265 = pneg %p83
        %p266 = pneg %p80
        %s267 = sand.u32 %s20, 1
        %s268 = scalar_lea.sflag [#allocation8], %s267
        %s269 = sand.u32 %s98, 1
        %s270 = smul.addr %s269, 8
        %s271 = scalar_lea.vmem [#allocation9], %s270
        %p272 = pneg %p111
        %p273 = pneg %p108
        %p274 = pneg %p137
        %p275 = pneg %p134
        %p276 = scmp.lt.s32.totalorder %s24, 1
        %s277 = scalar_select %p276, %s24, 1
        %s278 = scalar_lea.vmem %s3, %s277
        %s279 = smul.u32 2, %s25
        %s280 = smul.u32 2, %s25
        %s281 = smul.u32 2, %s25
        %p282 = scmp.lt.s32.totalorder %s24, 1
        %s283 = scalar_select %p282, %s24, 1
        %s284 = scalar_lea.vmem %s3, %s283
        %p285 = scmp.eq.s32.totalorder %s25, 0
        // Predicated region
        $region45: #{tpu_custom_call.1} parent=31 // pred_check
          %p286 = pneg %p285
        $region46: #{tpu_custom_call.1} parent=31 // pred_check_branch
          %288 = sbr.rel (%p286) target = $region48
        $region47: #{tpu_custom_call.1} parent=31 // pred_region
          %vm289 = vcmask 24576
          %290 = vst.msk [vmem:[#allocation2] sm:$0x1] %vm289, 0.0
          %291 = vst.msk [vmem:[#allocation3] sm:$0x1] %vm289, 0.0
          %292 = vst.msk [vmem:[#allocation4] sm:$0x1] %vm289, 0.0
        $region48: #{tpu_custom_call.1} parent=31 // pred_fallthru
          _
        %v293 = vld [vmem:[#allocation2] sm:$0x1]
        %v294 = vld [vmem:[%s230] sm:$0xff]
        %v296 = vcombine.high %v294, %v294
        %vm298 = vcmask 1043456
        %v299 = vsel %vm298, %v294, 0.0
        %v300 = vsel %vm298, %v296, 0.0
        %v301 = vadd.f32 %v299, %v300
        %302 = vadd.xlane.f32.xlu0 %v301
        %v303 = vpop.xlane.xlu0 %302
        %v305 = vlaneseq
        %v306 = vshrl.u32 %v305, 7
        %v307 = vsub.s32 0, %v306
        %v308 = vrot.slane %v303, %v307
        %v309 = vlaneseq
        %v310 = vshrl.u32 %v309, 7
        %v311 = vsub.s32 1, %v310
        %v312 = vrot.slane %v303, %v311
        %v313 = vlaneseq
        %v314 = vshrl.u32 %v313, 7
        %v315 = vsub.s32 2, %v314
        %v316 = vrot.slane %v303, %v315
        %v317 = vlaneseq
        %v318 = vshrl.u32 %v317, 7
        %v319 = vsub.s32 3, %v318
        %v320 = vrot.slane %v303, %v319
        %v321 = vcombine.low %v308, %v312
        %v322 = vcombine.low %v316, %v320
        %v324 = vunpack.c.l.s4 1966171168
        %v325 = vunpack.c.0.s8 %v324
        %v326 = vlaneseq
        %v327 = vshrl.u32 %v326, 7
        %v328 = vsub.s32 %v325, %v327
        %v329 = vrot.slane %v321, %v328
        %v331 = vunpack.c.l.s4 1966171168
        %v332 = vunpack.c.0.s8 %v331
        %v333 = vlaneseq
        %v334 = vshrl.u32 %v333, 7
        %v335 = vsub.s32 %v332, %v334
        %v336 = vrot.slane %v322, %v335
        %v337 = vcombine.low %v329, %v336
        %v339 = vunpack.c.l.s4 1966171168
        %v340 = vunpack.c.0.s8 %v339
        %v341 = vlaneseq
        %v342 = vshrl.u32 %v341, 7
        %v343 = vsub.s32 %v340, %v342
        %v344 = vrot.slane %v337, %v343
        %345 = vset.pattern.permute.xlu0 0
        %346 = vperm.xlu0 %345, %v344
        %v347 = vpop.permute.xlu0 %346
        %v348 = vlaneseq
        %v349 = vand.u32 %v348, 127
        %v350 = vlaneseq
        %v351 = vshrl.u32 %v350, 7
        %v352 = vsub.s32 %v349, %v351
        %v353 = vrot.slane %v347, %v352
        %v355 = vunpack.c.l.s4 1966171168
        %v356 = vunpack.c.0.s8 %v355
        %v357 = vlaneseq
        %v358 = vshrl.u32 %v357, 7
        %v359 = vsub.s32 %v356, %v358
        %v360 = vrot.slane %v353, %v359
        %v362 = vunpack.c.l.s4 1966171168
        %v363 = vunpack.c.0.s8 %v362
        %v364 = vlaneseq
        %v365 = vshrl.u32 %v364, 7
        %v366 = vsub.s32 %v363, %v365
        %v367 = vrot.slane %v360, %v366
        %v369 = vadd.f32 %v293, %v367
        %vm370 = vcmask 24576
        %371 = vst.msk [vmem:[#allocation2] sm:$0x1] %vm370, %v369
        %v372 = vld [vmem:[#allocation3] sm:$0x1]
        %v373 = vld [vmem:[%s239] sm:$0xff]
        %v375 = vcombine.high %v373, %v373
        %v377 = vsel %vm298, %v373, 0.0
        %v378 = vsel %vm298, %v375, 0.0
        %v379 = vadd.f32 %v377, %v378
        %380 = vadd.xlane.f32.xlu0 %v379
        %v381 = vpop.xlane.xlu0 %380
        %v383 = vlaneseq
        %v384 = vshrl.u32 %v383, 7
        %v385 = vsub.s32 0, %v384
        %v386 = vrot.slane %v381, %v385
        %v387 = vlaneseq
        %v388 = vshrl.u32 %v387, 7
        %v389 = vsub.s32 1, %v388
        %v390 = vrot.slane %v381, %v389
        %v391 = vlaneseq
        %v392 = vshrl.u32 %v391, 7
        %v393 = vsub.s32 2, %v392
        %v394 = vrot.slane %v381, %v393
        %v395 = vlaneseq
        %v396 = vshrl.u32 %v395, 7
        %v397 = vsub.s32 3, %v396
        %v398 = vrot.slane %v381, %v397
        %v399 = vcombine.low %v386, %v390
        %v400 = vcombine.low %v394, %v398
        %v402 = vunpack.c.l.s4 1966171168
        %v403 = vunpack.c.0.s8 %v402
        %v404 = vlaneseq
        %v405 = vshrl.u32 %v404, 7
        %v406 = vsub.s32 %v403, %v405
        %v407 = vrot.slane %v399, %v406
        %v409 = vunpack.c.l.s4 1966171168
        %v410 = vunpack.c.0.s8 %v409
        %v411 = vlaneseq
        %v412 = vshrl.u32 %v411, 7
        %v413 = vsub.s32 %v410, %v412
        %v414 = vrot.slane %v400, %v413
        %v415 = vcombine.low %v407, %v414
        %v417 = vunpack.c.l.s4 1966171168
        %v418 = vunpack.c.0.s8 %v417
        %v419 = vlaneseq
        %v420 = vshrl.u32 %v419, 7
        %v421 = vsub.s32 %v418, %v420
        %v422 = vrot.slane %v415, %v421
        %423 = vset.pattern.permute.xlu0 0
        %424 = vperm.xlu0 %423, %v422
        %v425 = vpop.permute.xlu0 %424
        %v426 = vlaneseq
        %v427 = vshrl.u32 %v426, 7
        %v428 = vsub.s32 %v349, %v427
        %v429 = vrot.slane %v425, %v428
        %v431 = vunpack.c.l.s4 1966171168
        %v432 = vunpack.c.0.s8 %v431
        %v433 = vlaneseq
        %v434 = vshrl.u32 %v433, 7
        %v435 = vsub.s32 %v432, %v434
        %v436 = vrot.slane %v429, %v435
        %v438 = vunpack.c.l.s4 1966171168
        %v439 = vunpack.c.0.s8 %v438
        %v440 = vlaneseq
        %v441 = vshrl.u32 %v440, 7
        %v442 = vsub.s32 %v439, %v441
        %v443 = vrot.slane %v436, %v442
        %v445 = vadd.f32 %v372, %v443
        %446 = vst.msk [vmem:[#allocation3] sm:$0x1] %vm370, %v445
        %v447 = vld [vmem:[#allocation4] sm:$0x1]
        %v448 = vld [vmem:[%s248] sm:$0xff]
        %v450 = vcombine.high %v448, %v448
        %v452 = vsel %vm298, %v448, 0.0
        %v453 = vsel %vm298, %v450, 0.0
        %v454 = vadd.f32 %v452, %v453
        %455 = vadd.xlane.f32.xlu0 %v454
        %v456 = vpop.xlane.xlu0 %455
        %v458 = vlaneseq
        %v459 = vshrl.u32 %v458, 7
        %v460 = vsub.s32 0, %v459
        %v461 = vrot.slane %v456, %v460
        %v462 = vlaneseq
        %v463 = vshrl.u32 %v462, 7
        %v464 = vsub.s32 1, %v463
        %v465 = vrot.slane %v456, %v464
        %v466 = vlaneseq
        %v467 = vshrl.u32 %v466, 7
        %v468 = vsub.s32 2, %v467
        %v469 = vrot.slane %v456, %v468
        %v470 = vlaneseq
        %v471 = vshrl.u32 %v470, 7
        %v472 = vsub.s32 3, %v471
        %v473 = vrot.slane %v456, %v472
        %v474 = vcombine.low %v461, %v465
        %v475 = vcombine.low %v469, %v473
        %v477 = vunpack.c.l.s4 1966171168
        %v478 = vunpack.c.0.s8 %v477
        %v479 = vlaneseq
        %v480 = vshrl.u32 %v479, 7
        %v481 = vsub.s32 %v478, %v480
        %v482 = vrot.slane %v474, %v481
        %v484 = vunpack.c.l.s4 1966171168
        %v485 = vunpack.c.0.s8 %v484
        %v486 = vlaneseq
        %v487 = vshrl.u32 %v486, 7
        %v488 = vsub.s32 %v485, %v487
        %v489 = vrot.slane %v475, %v488
        %v490 = vcombine.low %v482, %v489
        %v492 = vunpack.c.l.s4 1966171168
        %v493 = vunpack.c.0.s8 %v492
        %v494 = vlaneseq
        %v495 = vshrl.u32 %v494, 7
        %v496 = vsub.s32 %v493, %v495
        %v497 = vrot.slane %v490, %v496
        %498 = vset.pattern.permute.xlu0 0
        %499 = vperm.xlu0 %498, %v497
        %v500 = vpop.permute.xlu0 %499
        %v501 = vlaneseq
        %v502 = vshrl.u32 %v501, 7
        %v503 = vsub.s32 %v349, %v502
        %v504 = vrot.slane %v500, %v503
        %v506 = vunpack.c.l.s4 1966171168
        %v507 = vunpack.c.0.s8 %v506
        %v508 = vlaneseq
        %v509 = vshrl.u32 %v508, 7
        %v510 = vsub.s32 %v507, %v509
        %v511 = vrot.slane %v504, %v510
        %v513 = vunpack.c.l.s4 1966171168
        %v514 = vunpack.c.0.s8 %v513
        %v515 = vlaneseq
        %v516 = vshrl.u32 %v515, 7
        %v517 = vsub.s32 %v514, %v516
        %v518 = vrot.slane %v511, %v517
        %v520 = vadd.f32 %v447, %v518
        %521 = vst.msk [vmem:[#allocation4] sm:$0x1] %vm370, %v520
        // Predicated region
        $region49: #{tpu_custom_call.1} parent=31 // pred_check
          %p522 = pneg %p285
        $region50: #{tpu_custom_call.1} parent=31 // pred_check_branch
          %524 = sbr.rel (%p522) target = $region52
        $region51: #{tpu_custom_call.1} parent=31 // pred_region
          %v525 = vld [vmem:[#allocation2] sm:$0x1]
          %v526 = vld [vmem:[#allocation3] sm:$0x1]
          %v527 = vld [vmem:[#allocation4] sm:$0x1]
          %v528 = vmul.f32 %v525, %v526
          %v529 = vmul.f32 %v525, %v527
          %v530 = vadd.f32 %v528, %v529
          %v531 = vmul.f32 %v526, %v527
          %v532 = vadd.f32 %v530, %v531
          %v533 = vsel %vm370, %v532, 0.0
          %534 = vadd.xlane.f32.xlu0 %v533
          %v535 = vpop.xlane.xlu0 %534
          %v536 = vrot.slane %v535, 4
          %v537 = vadd.f32 %v535, %v536
          %v538 = vrot.slane %v537, 2
          %v539 = vadd.f32 %v537, %v538
          %v540 = vrot.slane %v539, 1
          %v541 = vadd.f32 %v539, %v540
          %s542 = vtos %v541
          %s543 = smul.f32 %s542, 1.5258789e-05
          %v544 = vstv %s543
          %vm545 = vcmask 0
          %546 = vst.msk [vmem:[%s284] sm:$0x1] %vm545, %v544
        $region52: #{tpu_custom_call.1} parent=31 // pred_fallthru
          _
        %p547 = scmp.lt.s32.totalorder %s24, 1
        %s548 = scalar_select %p547, %s24, 1
        %s549 = scalar_lea.vmem %s3, %s548
        // Predicated region
        $region53: #{tpu_custom_call.1} parent=31 // pred_check
          %p550 = pneg %p134
        $region54: #{tpu_custom_call.1} parent=31 // pred_check_branch
          %552 = sbr.rel (%p550) target = $region56
        $region55: #{tpu_custom_call.1} parent=31 // pred_region
          _
        $region56: #{tpu_custom_call.1} parent=31 // pred_fallthru
          _
      $region32: #{tpu_custom_call.1} parent=5 // pred_fallthru
        _
      %p553 = scmp.le.s32.totalorder 2, %s15
      // Predicated region
      $region57: #{tpu_custom_call.1} parent=5 // pred_check
        %p554 = pneg %p553
      $region58: #{tpu_custom_call.1} parent=5 // pred_check_branch
        %556 = sbr.rel (%p554) target = $region60
      $region59: #{tpu_custom_call.1} parent=5 // pred_region
        %s557 = ssub.s32 %s15, 2
        // Predicated region
        $region61: #{tpu_custom_call.1} parent=59 // pred_check
          %p558 = pneg %p140
        $region62: #{tpu_custom_call.1} parent=59 // pred_check_branch
          %560 = sbr.rel (%p558) target = $region64
        $region63: #{tpu_custom_call.1} parent=59 // pred_region
          %p561 = scmp.lt.s32.totalorder %s26, 1
          %s562 = scalar_select %p561, %s26, 1
          %s563 = scalar_lea.vmem %s3, %s562
        $region64: #{tpu_custom_call.1} parent=59 // pred_fallthru
          _
      $region60: #{tpu_custom_call.1} parent=5 // pred_fallthru
        _
    $region6: #{tpu_custom_call.1} parent=1 // loop_footer
      %s19 = sadd.s32 1, %s15
    $region7: #{tpu_custom_call.1} parent=1 // loop_footer_branch
      %14 = sbr.rel target = $region3
    $region8: #{tpu_custom_call.1} parent=1 // loop_exit
      _
    %564 = vsyncpa [#allocation6], 1
    %s565 = scalar_lea.sflag [#allocation6], 1
    %566 = vsyncpa %s565, 1
    %567 = vsyncpa [#allocation8], 1
    %s568 = scalar_lea.sflag [#allocation8], 1
    %569 = vsyncpa %s568, 1

</llo_original>
